<compile_context>
chip_gen: v7x
topology: tpu7x:2x2x1
jax: 0.10.0
libtpu: 0.0.40
codegen_flags: <defaults>
</compile_context>

<pallas_src>
import jax
import jax.numpy as jnp
from jax.experimental import pallas as pl
from jax.experimental.pallas import tpu as pltpu

_LANE = 128         # lane width: last-dim VMEM tiling unit
_SUBLANE = 8        # sublane width: second-to-last-dim tiling unit (f32)
_MAX_TILE_N = 8192  # beyond this the per-step pipeline overhead is negligible


def _cdiv(a, b):
    return (a + b - 1) // b


def _round_up(a, b):
    return _cdiv(a, b) * b


def _vmem_budget_bytes():
    """Per-generation scoped-VMEM target: ~75% of physical, 48 MiB fallback."""
    try:
        cap = getattr(pltpu.get_tpu_info(), "vmem_capacity_bytes", None)
        if cap:
            return (int(cap) * 3) // 4
    except Exception:  # hardware query unavailable -> conservative fallback
        pass
    return 48 * 1024 * 1024


_VMEM_BUDGET = _vmem_budget_bytes()


def _probe_single_buffer_spec():
    """True if BlockSpec accepts pipeline_mode=pl.Buffered(1) (grid-invariant operands)."""
    if not hasattr(pl, "Buffered"):
        return False
    try:
        pl.BlockSpec((_SUBLANE, _LANE), lambda i: (0, 0), pipeline_mode=pl.Buffered(1))
        return True
    except TypeError:
        return False


_SINGLE_BUFFER_CONSTS = _probe_single_buffer_spec()


def _const_spec(shape):
    """BlockSpec for a grid-invariant operand (weight / bias); single-buffered if possible."""
    index_map = lambda i: (0,) * len(shape)
    if _SINGLE_BUFFER_CONSTS:
        return pl.BlockSpec(shape, index_map, pipeline_mode=pl.Buffered(1))
    return pl.BlockSpec(shape, index_map)


def _choose_tile_n(n, c_in, c_out, itemsize):
    """Largest row tile whose lane/sublane-padded VMEM footprint fits the budget."""
    c_in_pad = _round_up(c_in, _LANE)    # x block's last dim is lane-padded in VMEM
    c_out_pad = _round_up(c_out, _LANE)  # out / weight / bias last dim likewise
    w_bufs = 1 if _SINGLE_BUFFER_CONSTS else 2
    fixed = itemsize * w_bufs * (_round_up(c_in, _SUBLANE) * c_out_pad  # resident weight
                                 + _SUBLANE * c_out_pad)                # bias row
    per_row = itemsize * 2 * (c_in_pad + c_out_pad)  # double-buffered x tile + y tile
    avail = _VMEM_BUDGET - fixed
    if avail < per_row * _SUBLANE:
        # TODO(synk): very wide layers would need a C_out (and K-accumulator) grid
        # axis; not needed for the channel counts this GNN module is used with.
        raise ValueError("LinearConv weight does not fit the VMEM budget")
    t = min(avail // per_row, _MAX_TILE_N)
    # MXU/lane-friendly granularity (256 for v6e/v7x's 256x256 MXU) when large.
    t = (t // 256) * 256 if t >= 256 else _round_up(t, _SUBLANE)
    t = max(t, _SUBLANE)
    # Never bigger than the (sublane-rounded) node count: small N -> single step.
    return int(min(t, _round_up(n, _SUBLANE)))


def _linear_kernel(x_ref, w_ref, b_ref, o_ref):
    # x_ref: (tile_n, C_in) node-feature tile
    # w_ref: (C_in, C_out)  full weight, resident every grid step
    # b_ref: (1, C_out)     bias row
    acc = jnp.dot(x_ref[...], w_ref[...], preferred_element_type=jnp.float32)
    acc = acc + b_ref[...].astype(jnp.float32)   # f32 bias add (no bf16 VPU on v5e)
    o_ref[...] = acc.astype(o_ref.dtype)


@jax.jit
def linear_conv_forward(x, weight, bias):
    """y = x @ weight + bias  (nn.Linear semantics; weight already [C_in, C_out])."""
    n, c_in = x.shape
    c_out = weight.shape[1]
    itemsize = jnp.dtype(x.dtype).itemsize

    tile_n = _choose_tile_n(n, c_in, c_out, itemsize)
    grid = (_cdiv(n, tile_n),)   # ragged last block handled by Pallas edge masking

    cost = pl.CostEstimate(
        flops=2 * n * c_in * c_out,
        transcendentals=0,
        bytes_accessed=itemsize * (n * c_in + c_in * c_out + c_out + n * c_out),
    )

    return pl.pallas_call(
        _linear_kernel,
        out_shape=jax.ShapeDtypeStruct((n, c_out), x.dtype),
        grid_spec=pltpu.PrefetchScalarGridSpec(
            num_scalar_prefetch=0,
            grid=grid,
            in_specs=[
                pl.BlockSpec((tile_n, c_in), lambda i: (i, 0)),   # x row tile
                _const_spec((c_in, c_out)),                       # resident weight
                _const_spec((1, c_out)),                          # bias row
            ],
            out_specs=pl.BlockSpec((tile_n, c_out), lambda i: (i, 0)),
        ),
        compiler_params=pltpu.CompilerParams(
            dimension_semantics=("parallel",),
            vmem_limit_bytes=_VMEM_BUDGET,
        ),
        cost_estimate=cost,
    )(x, weight, bias)


class LinearConvPallas:
    """JAX/Pallas port of autogllight LinearConv (plain linear layer; graph args ignored)."""

    def __init__(self, in_channels, out_channels, bias=True, key=None):
        self.in_channels = in_channels
        self.out_channels = out_channels
        if key is None:
            key = jax.random.PRNGKey(0)
        k_w, k_b = jax.random.split(key)
        bound = 1.0 / (in_channels ** 0.5)
        # Stored once as [C_in, C_out]; the kernel consumes it as-is (no per-call
        # padding or copying of parameters).
        self.weight = jax.random.uniform(
            k_w, (in_channels, out_channels), jnp.float32, -bound, bound)
        if bias:
            self.bias = jax.random.uniform(
                k_b, (1, out_channels), jnp.float32, -bound, bound)
        else:
            self.bias = jnp.zeros((1, out_channels), jnp.float32)

    def __call__(self, x, edge_index=None, edge_weight=None):
        # edge_index / edge_weight are intentionally ignored (matches PyTorch).
        return linear_conv_forward(x, self.weight, self.bias)

    def __repr__(self):
        return "{}({}, {})".format(
            self.__class__.__name__, self.in_channels, self.out_channels)


if __name__ == "__main__":
    key = jax.random.PRNGKey(0)
    k_x, k_p = jax.random.split(key)

    # Small, deliberately ragged shapes: N is not a multiple of the row tile and
    # C_out is not a multiple of 128 — exercises the masked edge-block paths.
    num_nodes = 200
    in_channels = 32
    out_channels = 48

    x = jax.random.normal(k_x, (num_nodes, in_channels), jnp.float32)
    edge_index = jnp.zeros((2, 8), jnp.int32)   # ignored by the forward pass

    mod = LinearConvPallas(in_channels, out_channels, bias=True, key=k_p)
    y = mod(x, edge_index)
    y = jax.block_until_ready(y)

    # Correctness check against plain-JAX reference of nn.Linear semantics.
    y_ref = x @ mod.weight + mod.bias
    assert y.shape == (num_nodes, out_channels)
    assert jnp.allclose(y, y_ref, atol=1e-4, rtol=1e-4), "mismatch vs reference"

    print("KERNEL_OK")
</pallas_src>

<mosaic_0001>
module attributes {stable_mosaic.version = 11 : i64} {
  func.func @_linear_kernel(%arg0: i32, %arg1: memref<200x32xf32, #tpu.memory_space<vmem>>, %arg2: memref<32x48xf32, #tpu.memory_space<vmem>>, %arg3: memref<1x48xf32, #tpu.memory_space<vmem>>, %arg4: memref<200x48xf32, #tpu.memory_space<vmem>>) attributes {dimension_semantics = [#tpu.dimension_semantics<parallel>], iteration_bounds = array<i64: 1>, scalar_prefetch = 0 : i64, scratch_operands = 0 : i64, tpu.core_type = #tpu.core_type<tc>, window_params = [{transform_indices = @transform_0, window_bounds = array<i64: 200, 32>}, {pipeline_mode = #tpu.pipeline_mode<synchronous>, transform_indices = @transform_1, window_bounds = array<i64: 32, 48>}, {pipeline_mode = #tpu.pipeline_mode<synchronous>, transform_indices = @transform_2, window_bounds = array<i64: 1, 48>}, {transform_indices = @transform_3, window_bounds = array<i64: 200, 48>}]} {
    %c0 = arith.constant 0 : index
    %c0_0 = arith.constant 0 : index
    %0 = vector.load %arg1[%c0, %c0_0] : memref<200x32xf32, #tpu.memory_space<vmem>>, vector<200x32xf32>
    %c0_1 = arith.constant 0 : index
    %c0_2 = arith.constant 0 : index
    %1 = vector.load %arg2[%c0_1, %c0_2] : memref<32x48xf32, #tpu.memory_space<vmem>>, vector<32x48xf32>
    %cst = arith.constant dense<0.000000e+00> : vector<200x48xf32>
    %2 = tpu.matmul %0, %1, %cst {dimension_numbers = #tpu.dot_dimension_numbers<[1], [0], [0], [1], [0, 0, 1, 1], [], []>} : vector<200x32xf32>, vector<32x48xf32>, vector<200x48xf32> -> vector<200x48xf32>
    %c0_3 = arith.constant 0 : index
    %c0_4 = arith.constant 0 : index
    %3 = vector.load %arg3[%c0_3, %c0_4] : memref<1x48xf32, #tpu.memory_space<vmem>>, vector<1x48xf32>
    %4 = vector.broadcast %3 : vector<1x48xf32> to vector<200x48xf32>
    %5 = arith.addf %2, %4 : vector<200x48xf32>
    %c0_5 = arith.constant 0 : index
    %c0_6 = arith.constant 0 : index
    %6 = vector.load %arg4[%c0_5, %c0_6] : memref<200x48xf32, #tpu.memory_space<vmem>>, vector<200x48xf32>
    tpu.vector_store %arg4[%c0_5, %c0_6], %5 {strides = array<i32>} : memref<200x48xf32, #tpu.memory_space<vmem>>, vector<200x48xf32>,
    return
  }
  func.func @transform_0(%arg0: i32) -> (i32, i32) {
    %c0_i32 = arith.constant 0 : i32
    %c0_i32_0 = arith.constant 0 : i32
    return %arg0, %c0_i32 : i32, i32
  }
  func.func @transform_1(%arg0: i32) -> (i32, i32) {
    %c0_i32 = arith.constant 0 : i32
    %c0_i32_0 = arith.constant 0 : i32
    %c0_i32_1 = arith.constant 0 : i32
    return %c0_i32, %c0_i32_0 : i32, i32
  }
  func.func @transform_2(%arg0: i32) -> (i32, i32) {
    %c0_i32 = arith.constant 0 : i32
    %c0_i32_0 = arith.constant 0 : i32
    %c0_i32_1 = arith.constant 0 : i32
    return %c0_i32, %c0_i32_0 : i32, i32
  }
  func.func @transform_3(%arg0: i32) -> (i32, i32) {
    %c0_i32 = arith.constant 0 : i32
    %c0_i32_0 = arith.constant 0 : i32
    return %arg0, %c0_i32 : i32, i32
  }
}

</mosaic_0001>

<llo_original>
// kernel: linear_conv_forward.1
$region0: #{linear_conv_forward.1}
  #allocation0 [shape = 'u32[]', space=smem, size = 0x4, offset = 0x4, fixed_abs, tag = 'smem constant byte address 0x4 - core index']
  #allocation1 [shape = 'u32[144,128]{1,0:T(1,128)}', space=vmem, size = 0x12000, scoped, tag = 'internal scratch']
  %s0 = inlined_call_operand.vmem [shape: f32[200,32], index: 0, kind: input, shape index: {}]
  %s1 = inlined_call_operand.vmem [shape: f32[32,48], index: 1, kind: input, shape index: {}]
  %s2 = inlined_call_operand.vmem [shape: f32[1,48], index: 2, kind: input, shape index: {}]
  %s3 = inlined_call_operand.vmem [shape: f32[200,48], index: 3, kind: output, shape index: {}]
  %s4 = sld [smem:[#allocation0]]
  $region22: #{linear_conv_forward.1} parent=0
    _
  %s6 = ssub.s32 1, %s4
  %s7 = scalar_select 0, %s6, %s4
  // Predicated region
  $region2: #{linear_conv_forward.1} parent=0 // pred_check
    _
  $region3: #{linear_conv_forward.1} parent=0 // pred_check_branch
    %9 = sbr.rel (0) target = $region5
  $region4: #{linear_conv_forward.1} parent=0 // pred_region
    _
  $region5: #{linear_conv_forward.1} parent=0 // pred_fallthru
    _
  // Predicated region
  $region6: #{linear_conv_forward.1} parent=0 // pred_check
    _
  $region7: #{linear_conv_forward.1} parent=0 // pred_check_branch
    %11 = sbr.rel (0) target = $region9
  $region8: #{linear_conv_forward.1} parent=0 // pred_region
    _
  $region9: #{linear_conv_forward.1} parent=0 // pred_fallthru
    _
  // Predicated region
  $region10: #{linear_conv_forward.1} parent=0 // pred_check
    _
  $region11: #{linear_conv_forward.1} parent=0 // pred_check_branch
    %13 = sbr.rel (0) target = $region13
  $region12: #{linear_conv_forward.1} parent=0 // pred_region
    _
  $region13: #{linear_conv_forward.1} parent=0 // pred_fallthru
    _
  %v14 = vld [vmem:[%s0] sm:$0xff]
  %v15 = vld [vmem:[%s0 + $0x8] sm:$0xff]
  %v16 = vld [vmem:[%s0 + $0x10] sm:$0xff]
  %v17 = vld [vmem:[%s0 + $0x18] sm:$0xff]
  %v18 = vld [vmem:[%s0 + $0x20] sm:$0xff]
  %v19 = vld [vmem:[%s0 + $0x28] sm:$0xff]
  %v20 = vld [vmem:[%s0 + $0x30] sm:$0xff]
  %v21 = vld [vmem:[%s0 + $0x38] sm:$0xff]
  %v22 = vld [vmem:[%s0 + $0x40] sm:$0xff]
  %v23 = vld [vmem:[%s0 + $0x48] sm:$0xff]
  %v24 = vld [vmem:[%s0 + $0x50] sm:$0xff]
  %v25 = vld [vmem:[%s0 + $0x58] sm:$0xff]
  %v26 = vld [vmem:[%s0 + $0x60] sm:$0xff]
  %v27 = vld [vmem:[%s0 + $0x68] sm:$0xff]
  %v28 = vld [vmem:[%s0 + $0x70] sm:$0xff]
  %v29 = vld [vmem:[%s0 + $0x78] sm:$0xff]
  %v30 = vld [vmem:[%s0 + $0x80] sm:$0xff]
  %v31 = vld [vmem:[%s0 + $0x88] sm:$0xff]
  %v32 = vld [vmem:[%s0 + $0x90] sm:$0xff]
  %v33 = vld [vmem:[%s0 + $0x98] sm:$0xff]
  %v34 = vld [vmem:[%s0 + $0xa0] sm:$0xff]
  %v35 = vld [vmem:[%s0 + $0xa8] sm:$0xff]
  %v36 = vld [vmem:[%s0 + $0xb0] sm:$0xff]
  %v37 = vld [vmem:[%s0 + $0xb8] sm:$0xff]
  %v38 = vld [vmem:[%s0 + $0xc0] sm:$0xff]
  %v39 = vld [vmem:[%s1] sm:$0xff]
  %v40 = vld [vmem:[%s1 + $0x8] sm:$0xff]
  %v41 = vld [vmem:[%s1 + $0x10] sm:$0xff]
  %v42 = vld [vmem:[%s1 + $0x18] sm:$0xff]
  %v43 = vld [vmem:[%s2] sm:$0x1]
  %v45 = vlaneseq
  %v46 = vshrl.u32 %v45, 7
  %v47 = vsub.s32 0, %v46
  %v48 = vrot.slane %v43, %v47
  %vm50 = vcmask 261120
  %v52 = vsel %vm50, %v14, 0
  %v55 = vsel %vm50, %v15, 0
  %v58 = vsel %vm50, %v16, 0
  %v61 = vsel %vm50, %v17, 0
  %v64 = vsel %vm50, %v18, 0
  %v67 = vsel %vm50, %v19, 0
  %v70 = vsel %vm50, %v20, 0
  %v73 = vsel %vm50, %v21, 0
  %v76 = vsel %vm50, %v22, 0
  %v79 = vsel %vm50, %v23, 0
  %v82 = vsel %vm50, %v24, 0
  %v85 = vsel %vm50, %v25, 0
  %v88 = vsel %vm50, %v26, 0
  %v91 = vsel %vm50, %v27, 0
  %v94 = vsel %vm50, %v28, 0
  %v97 = vsel %vm50, %v29, 0
  %v100 = vsel %vm50, %v30, 0
  %v103 = vsel %vm50, %v31, 0
  %v106 = vsel %vm50, %v32, 0
  %v109 = vsel %vm50, %v33, 0
  %v112 = vsel %vm50, %v34, 0
  %v115 = vsel %vm50, %v35, 0
  %v118 = vsel %vm50, %v36, 0
  %v121 = vsel %vm50, %v37, 0
  %v124 = vsel %vm50, %v38, 0
  %126 = vmatprep.subr.mxu0 0.0
  %127 = vmatpush1.msra.mxu0 %v39
  %128 = vmatprep.subr.mxu0 0.0
  %129 = vmatpush1.msra.mxu0 %v40
  %130 = vmatprep.subr.mxu0 0.0
  %131 = vmatpush1.msra.mxu0 %v41
  %132 = vmatprep.subr.mxu0 0.0
  %133 = vmatpush1.msra.mxu0 %v42
  %134 = vmatprep.subr.mxu0 0.0
  %135 = vmatpush1.msra.mxu0 0.0
  %136 = vmatprep.subr.mxu0 0.0
  %137 = vmatpush1.msra.mxu0 0.0
  %138 = vmatprep.subr.mxu0 0.0
  %139 = vmatpush1.msra.mxu0 0.0
  %140 = vmatprep.subr.mxu0 0.0
  %141 = vmatpush1.msra.mxu0 0.0
  %142 = vmatprep.subr.mxu0 0.0
  %143 = vmatpush1.msra.mxu0 0.0
  %144 = vmatprep.subr.mxu0 0.0
  %145 = vmatpush1.msra.mxu0 0.0
  %146 = vmatprep.subr.mxu0 0.0
  %147 = vmatpush1.msra.mxu0 0.0
  %148 = vmatprep.subr.mxu0 0.0
  %149 = vmatpush1.msra.mxu0 0.0
  %150 = vmatprep.subr.mxu0 0.0
  %151 = vmatpush1.msra.mxu0 0.0
  %152 = vmatprep.subr.mxu0 0.0
  %153 = vmatpush1.msra.mxu0 0.0
  %154 = vmatprep.subr.mxu0 0.0
  %155 = vmatpush1.msra.mxu0 0.0
  %156 = vmatprep.subr.mxu0 0.0
  %157 = vmatpush1.msra.mxu0 0.0
  %158 = vmatprep.subr.mxu0 0.0
  %159 = vmatpush1.msra.mxu0 0.0
  %160 = vmatprep.subr.mxu0 0.0
  %161 = vmatpush1.msra.mxu0 0.0
  %162 = vmatprep.subr.mxu0 0.0
  %163 = vmatpush1.msra.mxu0 0.0
  %164 = vmatprep.subr.mxu0 0.0
  %165 = vmatpush1.msra.mxu0 0.0
  %166 = vmatprep.subr.mxu0 0.0
  %167 = vmatpush1.msra.mxu0 0.0
  %168 = vmatprep.subr.mxu0 0.0
  %169 = vmatpush1.msra.mxu0 0.0
  %170 = vmatprep.subr.mxu0 0.0
  %171 = vmatpush1.msra.mxu0 0.0
  %172 = vmatprep.subr.mxu0 0.0
  %173 = vmatpush1.msra.mxu0 0.0
  %174 = vmatprep.subr.mxu0 0.0
  %175 = vmatpush1.msra.mxu0 0.0
  %176 = vmatprep.subr.mxu0 0.0
  %177 = vmatpush1.msra.mxu0 0.0
  %178 = vmatprep.subr.mxu0 0.0
  %179 = vmatpush1.msra.mxu0 0.0
  %180 = vmatprep.subr.mxu0 0.0
  %181 = vmatpush1.msra.mxu0 0.0
  %182 = vmatprep.subr.mxu0 0.0
  %183 = vmatpush1.msra.mxu0 0.0
  %184 = vmatprep.subr.mxu0 0.0
  %185 = vmatpush1.msra.mxu0 0.0
  %186 = vmatprep.subr.mxu0 0.0
  %187 = vmatpush1.msra.mxu0 0.0
  %188 = vmatprep.subr.mxu0 0.0
  %189 = vmatpush1.msra.mxu0 0.0
  %190 = vmatprep.mubr.f32.mxu0 0.0
  %191 = vmatmul.mubr.f32.gmra.mrb[0].mxu0 %v52
  %v192 = vpop.f32.mrb[0].mxu0
  %v193 = vadd.f32 %v48, %v192
  %v194 = vpop.f32.mrb[0].mxu0
  %195 = vmatprep.mubr.f32.mxu0 0.0
  %196 = vmatmul.mubr.f32.gmra.mrb[0].mxu0 %v55
  %v197 = vpop.f32.mrb[0].mxu0
  %v198 = vadd.f32 %v48, %v197
  %v199 = vpop.f32.mrb[0].mxu0
  %200 = vmatprep.mubr.f32.mxu0 0.0
  %201 = vmatmul.mubr.f32.gmra.mrb[0].mxu0 %v58
  %v202 = vpop.f32.mrb[0].mxu0
  %v203 = vadd.f32 %v48, %v202
  %v204 = vpop.f32.mrb[0].mxu0
  %205 = vmatprep.mubr.f32.mxu0 0.0
  %206 = vmatmul.mubr.f32.gmra.mrb[0].mxu0 %v61
  %v207 = vpop.f32.mrb[0].mxu0
  %v208 = vadd.f32 %v48, %v207
  %v209 = vpop.f32.mrb[0].mxu0
  %210 = vmatprep.mubr.f32.mxu0 0.0
  %211 = vmatmul.mubr.f32.gmra.mrb[0].mxu0 %v64
  %v212 = vpop.f32.mrb[0].mxu0
  %v213 = vadd.f32 %v48, %v212
  %v214 = vpop.f32.mrb[0].mxu0
  %215 = vmatprep.mubr.f32.mxu0 0.0
  %216 = vmatmul.mubr.f32.gmra.mrb[0].mxu0 %v67
  %v217 = vpop.f32.mrb[0].mxu0
  %v218 = vadd.f32 %v48, %v217
  %v219 = vpop.f32.mrb[0].mxu0
  %220 = vmatprep.mubr.f32.mxu0 0.0
  %221 = vmatmul.mubr.f32.gmra.mrb[0].mxu0 %v70
  %v222 = vpop.f32.mrb[0].mxu0
  %v223 = vadd.f32 %v48, %v222
  %v224 = vpop.f32.mrb[0].mxu0
  %225 = vmatprep.mubr.f32.mxu0 0.0
  %226 = vmatmul.mubr.f32.gmra.mrb[0].mxu0 %v73
  %v227 = vpop.f32.mrb[0].mxu0
  %v228 = vadd.f32 %v48, %v227
  %v229 = vpop.f32.mrb[0].mxu0
  %230 = vmatprep.mubr.f32.mxu0 0.0
  %231 = vmatmul.mubr.f32.gmra.mrb[0].mxu0 %v76
  %v232 = vpop.f32.mrb[0].mxu0
  %v233 = vadd.f32 %v48, %v232
  %v234 = vpop.f32.mrb[0].mxu0
  %235 = vmatprep.mubr.f32.mxu0 0.0
  %236 = vmatmul.mubr.f32.gmra.mrb[0].mxu0 %v79
  %v237 = vpop.f32.mrb[0].mxu0
  %v238 = vadd.f32 %v48, %v237
  %v239 = vpop.f32.mrb[0].mxu0
  %240 = vmatprep.mubr.f32.mxu0 0.0
  %241 = vmatmul.mubr.f32.gmra.mrb[0].mxu0 %v82
  %v242 = vpop.f32.mrb[0].mxu0
  %v243 = vadd.f32 %v48, %v242
  %v244 = vpop.f32.mrb[0].mxu0
  %245 = vmatprep.mubr.f32.mxu0 0.0
  %246 = vmatmul.mubr.f32.gmra.mrb[0].mxu0 %v85
  %v247 = vpop.f32.mrb[0].mxu0
  %v248 = vadd.f32 %v48, %v247
  %v249 = vpop.f32.mrb[0].mxu0
  %250 = vmatprep.mubr.f32.mxu0 0.0
  %251 = vmatmul.mubr.f32.gmra.mrb[0].mxu0 %v88
  %v252 = vpop.f32.mrb[0].mxu0
  %v253 = vadd.f32 %v48, %v252
  %v254 = vpop.f32.mrb[0].mxu0
  %255 = vmatprep.mubr.f32.mxu0 0.0
  %256 = vmatmul.mubr.f32.gmra.mrb[0].mxu0 %v91
  %v257 = vpop.f32.mrb[0].mxu0
  %v258 = vadd.f32 %v48, %v257
  %v259 = vpop.f32.mrb[0].mxu0
  %260 = vmatprep.mubr.f32.mxu0 0.0
  %261 = vmatmul.mubr.f32.gmra.mrb[0].mxu0 %v94
  %v262 = vpop.f32.mrb[0].mxu0
  %v263 = vadd.f32 %v48, %v262
  %v264 = vpop.f32.mrb[0].mxu0
  %265 = vmatprep.mubr.f32.mxu0 0.0
  %266 = vmatmul.mubr.f32.gmra.mrb[0].mxu0 %v97
  %v267 = vpop.f32.mrb[0].mxu0
  %v268 = vadd.f32 %v48, %v267
  %v269 = vpop.f32.mrb[0].mxu0
  %270 = vmatprep.mubr.f32.mxu0 0.0
  %271 = vmatmul.mubr.f32.gmra.mrb[0].mxu0 %v100
  %v272 = vpop.f32.mrb[0].mxu0
  %v273 = vadd.f32 %v48, %v272
  %v274 = vpop.f32.mrb[0].mxu0
  %275 = vmatprep.mubr.f32.mxu0 0.0
  %276 = vmatmul.mubr.f32.gmra.mrb[0].mxu0 %v103
  %v277 = vpop.f32.mrb[0].mxu0
  %v278 = vadd.f32 %v48, %v277
  %v279 = vpop.f32.mrb[0].mxu0
  %280 = vmatprep.mubr.f32.mxu0 0.0
  %281 = vmatmul.mubr.f32.gmra.mrb[0].mxu0 %v106
  %v282 = vpop.f32.mrb[0].mxu0
  %v283 = vadd.f32 %v48, %v282
  %v284 = vpop.f32.mrb[0].mxu0
  %285 = vmatprep.mubr.f32.mxu0 0.0
  %286 = vmatmul.mubr.f32.gmra.mrb[0].mxu0 %v109
  %v287 = vpop.f32.mrb[0].mxu0
  %v288 = vadd.f32 %v48, %v287
  %v289 = vpop.f32.mrb[0].mxu0
  %290 = vmatprep.mubr.f32.mxu0 0.0
  %291 = vmatmul.mubr.f32.gmra.mrb[0].mxu0 %v112
  %v292 = vpop.f32.mrb[0].mxu0
  %v293 = vadd.f32 %v48, %v292
  %v294 = vpop.f32.mrb[0].mxu0
  %295 = vmatprep.mubr.f32.mxu0 0.0
  %296 = vmatmul.mubr.f32.gmra.mrb[0].mxu0 %v115
  %v297 = vpop.f32.mrb[0].mxu0
  %v298 = vadd.f32 %v48, %v297
  %v299 = vpop.f32.mrb[0].mxu0
  %300 = vmatprep.mubr.f32.mxu0 0.0
  %301 = vmatmul.mubr.f32.gmra.mrb[0].mxu0 %v118
  %v302 = vpop.f32.mrb[0].mxu0
  %v303 = vadd.f32 %v48, %v302
  %v304 = vpop.f32.mrb[0].mxu0
  %305 = vmatprep.mubr.f32.mxu0 0.0
  %306 = vmatmul.mubr.f32.gmra.mrb[0].mxu0 %v121
  %v307 = vpop.f32.mrb[0].mxu0
  %v308 = vadd.f32 %v48, %v307
  %v309 = vpop.f32.mrb[0].mxu0
  %310 = vmatprep.mubr.f32.mxu0 0.0
  %311 = vmatmul.mubr.f32.gmra.mrb[0].mxu0 %v124
  %v312 = vpop.f32.mrb[0].mxu0
  %v313 = vadd.f32 %v48, %v312
  %v314 = vpop.f32.mrb[0].mxu0
  %315 = vdwg.mxu0
  %vm316 = vcmask 392192
  %317 = vst.msk [vmem:[%s3] sm:$0xff] %vm316, %v193
  %318 = vst.msk [vmem:[%s3 + $0x8] sm:$0xff] %vm316, %v198
  %319 = vst.msk [vmem:[%s3 + $0x10] sm:$0xff] %vm316, %v203
  %320 = vst.msk [vmem:[%s3 + $0x18] sm:$0xff] %vm316, %v208
  %321 = vst.msk [vmem:[%s3 + $0x20] sm:$0xff] %vm316, %v213
  %322 = vst.msk [vmem:[%s3 + $0x28] sm:$0xff] %vm316, %v218
  %323 = vst.msk [vmem:[%s3 + $0x30] sm:$0xff] %vm316, %v223
  %324 = vst.msk [vmem:[%s3 + $0x38] sm:$0xff] %vm316, %v228
  %325 = vst.msk [vmem:[%s3 + $0x40] sm:$0xff] %vm316, %v233
  %326 = vst.msk [vmem:[%s3 + $0x48] sm:$0xff] %vm316, %v238
  %327 = vst.msk [vmem:[%s3 + $0x50] sm:$0xff] %vm316, %v243
  %328 = vst.msk [vmem:[%s3 + $0x58] sm:$0xff] %vm316, %v248
  %329 = vst.msk [vmem:[%s3 + $0x60] sm:$0xff] %vm316, %v253
  %330 = vst.msk [vmem:[%s3 + $0x68] sm:$0xff] %vm316, %v258
  %331 = vst.msk [vmem:[%s3 + $0x70] sm:$0xff] %vm316, %v263
  %332 = vst.msk [vmem:[%s3 + $0x78] sm:$0xff] %vm316, %v268
  %333 = vst.msk [vmem:[%s3 + $0x80] sm:$0xff] %vm316, %v273
  %334 = vst.msk [vmem:[%s3 + $0x88] sm:$0xff] %vm316, %v278
  %335 = vst.msk [vmem:[%s3 + $0x90] sm:$0xff] %vm316, %v283
  %336 = vst.msk [vmem:[%s3 + $0x98] sm:$0xff] %vm316, %v288
  %337 = vst.msk [vmem:[%s3 + $0xa0] sm:$0xff] %vm316, %v293
  %338 = vst.msk [vmem:[%s3 + $0xa8] sm:$0xff] %vm316, %v298
  %339 = vst.msk [vmem:[%s3 + $0xb0] sm:$0xff] %vm316, %v303
  %340 = vst.msk [vmem:[%s3 + $0xb8] sm:$0xff] %vm316, %v308
  %341 = vst.msk [vmem:[%s3 + $0xc0] sm:$0xff] %vm316, %v313
  // Predicated region
  $region14: #{linear_conv_forward.1} parent=0 // pred_check
    _
  $region15: #{linear_conv_forward.1} parent=0 // pred_check_branch
    %343 = sbr.rel (0) target = $region17
  $region16: #{linear_conv_forward.1} parent=0 // pred_region
    _
  $region17: #{linear_conv_forward.1} parent=0 // pred_fallthru
    _
  // Predicated region
  $region18: #{linear_conv_forward.1} parent=0 // pred_check
    _
  $region19: #{linear_conv_forward.1} parent=0 // pred_check_branch
    %345 = sbr.rel (0) target = $region21
  $region20: #{linear_conv_forward.1} parent=0 // pred_region
    _
  $region21: #{linear_conv_forward.1} parent=0 // pred_fallthru
    _

</llo_original>
